<compile_context>
chip_gen: v7x
topology: tpu7x:2x2x1
jax: 0.10.0
libtpu: 0.0.40
codegen_flags: <defaults>
</compile_context>

<pallas_src>
import jax
import jax.numpy as jnp
from jax.experimental import pallas as pl
from jax.experimental.pallas import tpu as pltpu


# ---------------------------------------------------------------------------
# Helpers
# ---------------------------------------------------------------------------
def _bilinear_matrix(n_in, n_out):
    """Row-interpolation matrix matching nn.UpsamplingBilinear2d (align_corners=True)."""
    if n_in == 1:
        return jnp.ones((n_out, 1), jnp.float32)
    dst = jnp.arange(n_out, dtype=jnp.float32)
    src = dst * (n_in - 1) / (n_out - 1)
    lo = jnp.clip(jnp.floor(src).astype(jnp.int32), 0, n_in - 2)
    frac = src - lo.astype(jnp.float32)
    rows = jnp.arange(n_out)
    a = jnp.zeros((n_out, n_in), jnp.float32)
    a = a.at[rows, lo].add(1.0 - frac)
    a = a.at[rows, lo + 1].add(frac)
    return a


def _round_up(x, m):
    return -(-x // m) * m


def _vmem_capacity_bytes():
    try:
        return int(pltpu.get_tpu_info().vmem_capacity_bytes)
    except Exception:
        return 64 * 1024 * 1024  # v7x-safe fallback


def _pick_tile(n_pos, ts, n_batch, budget_bytes, bytes_per_lane, fixed_bytes,
               min_steps=8):
    """Spatial tile (in lanes, multiple of ts) sized for VMEM and occupancy.

    cdiv-based: no divisibility requirement on Ho*Wo; capped so the grid has at
    least `min_steps` steps (keeps both v7x TensorCores fed and gives the
    pipeline something to prefetch against)."""
    n_blocks = -(-n_pos // ts)
    cap = max(1, (budget_bytes - fixed_bytes) // (bytes_per_lane * ts))
    occ = max(1, (n_batch * n_blocks) // min_steps)
    return max(1, min(n_blocks, cap, occ)) * ts


# ---------------------------------------------------------------------------
# Wrapper: Conv_UP_Block forward
# ---------------------------------------------------------------------------
def conv_up_block_forward(x_nchw, weight, bias, gamma, beta, *,
                          stride=1, padding=1, eps=1e-5):
    """x_nchw: (N, Cin, H, W); weight: (Cout, Cin, kh, kw) (PyTorch layout)."""
    N, Cin, H, W = x_nchw.shape
    Cout, wc, kh, kw = weight.shape
    assert wc == Cin
    # Fused path covers the module's configuration: stride 1, 'same' odd kernel.
    assert stride == 1 and 2 * padding == kh - 1 == kw - 1, (
        "fused path implemented for stride=1, padding=(k-1)//2")
    # TODO(synk): general stride / asymmetric padding needs a strided-window variant.
    assert 2 * W >= 2  # wrapped-width masks assume at least 2 output columns

    p = padding
    Hu, Wu = 2 * H, 2 * W            # upsampled size
    Ho, Wo = Hu, Wu                  # 'same' conv output size
    n_pos = Ho * Wo                  # flat output positions per sample
    g_top = 1                        # guard row so every tap offset is >= 0

    # ---- tiling (generation-aware VMEM budget + occupancy) ----------------
    max_off = kh * Wu + (kw - 1) - p           # largest in-window read offset
    ts = _round_up(max_off, 128)               # halo block width (lanes)
    vmem_cap = _vmem_capacity_bytes()
    budget = vmem_cap // 3                     # ~21 MiB on v7x, ~42 MiB on v5e/v6e
    bytes_per_lane = 2 * (2 * Cin + 4 + 4 * Cout)   # dbl-buffered main blk + wo + out
    fixed = 4 * Cin * ts + kh * kw * Cout * 256     # halo blk + weights (rough)
    tm = _pick_tile(n_pos, ts, N, budget, bytes_per_lane, fixed)
    step_blocks = tm // ts
    n_tiles = -(-n_pos // tm)
    grid = (N, n_tiles)

    # ---- fused upsample + H-pad: ONE bf16 HBM write ------------------------
    # Conv zero-pad rows and bottom guard rows are zero rows of `ah`, so the
    # einsum produces the padded, flattened image directly (no jnp.pad copies).
    need_flat = n_tiles * tm + ts              # all blocks fully in-bounds
    rows_core = g_top + p + Hu + p
    Rtot = max(rows_core, -(-need_flat // Wu))
    ah = jnp.zeros((Rtot, H), jnp.float32)
    ah = ah.at[g_top + p:g_top + p + Hu].set(_bilinear_matrix(H, Hu))
    aw = _bilinear_matrix(W, Wu)               # (Wu, W)
    xflat = jnp.einsum("rh,nchw,pw->ncrp", ah, x_nchw.astype(jnp.float32), aw
                       ).astype(jnp.bfloat16).reshape(N, Cin, Rtot * Wu)

    # Per-position column index (f32) with -1 sentinel for the cdiv tail;
    # drives the wrapped-width boundary masks and the stats validity mask.
    L_mask = n_tiles * tm
    pos = jnp.arange(L_mask, dtype=jnp.int32)
    wo_arr = jnp.where(pos < n_pos, (pos % Wo).astype(jnp.float32), -1.0
                       ).reshape(1, L_mask)

    # Weights as (kh*kw, Cout, Cin) so each tap is a cheap leading-dim index.
    w9 = weight.astype(jnp.bfloat16).reshape(Cout, Cin, kh * kw).transpose(2, 0, 1)

    # ---- shared in-kernel fused conv tile ----------------------------------
    def conv_tile(xa_ref, xb_ref, wo_ref, w_ref):
        # Window = main block + small halo block (lane-concatenated values).
        xw = jnp.concatenate([xa_ref[0], xb_ref[0]], axis=1)   # (Cin, tm+ts) bf16
        wo = wo_ref[...]                                        # (1, tm) f32
        y = jnp.zeros((Cout, tm), jnp.float32)
        for dj in range(kw):
            acc = jnp.zeros((Cout, tm), jnp.float32)
            for di in range(kh):
                off = (g_top + di) * Wu + dj - p                # static lane offset
                acc = acc + jnp.dot(w_ref[di * kw + dj], xw[:, off:off + tm],
                                    preferred_element_type=jnp.float32)
            # Wrapped-width fixup: zero taps that should have read the virtual
            # left / right zero padding of each image row.
            if dj < p:
                acc = acc * (wo >= float(p - dj)).astype(jnp.float32)
            elif dj > p:
                acc = acc * (wo < float(Wo + p - dj)).astype(jnp.float32)
            y = y + acc
        return y

    # ---- Kernel 1: per-tile partial channel statistics ---------------------
    def stats_kernel(xa_ref, xb_ref, wo_ref, w_ref, stats_ref):
        y = conv_tile(xa_ref, xb_ref, wo_ref, w_ref)            # conv w/o bias
        valid = (wo_ref[...] >= 0.0).astype(jnp.float32)        # mask cdiv tail
        ym = y * valid
        s = jnp.sum(ym, axis=1, keepdims=True)                  # (Cout, 1)
        sq = jnp.sum(ym * ym, axis=1, keepdims=True)            # (Cout, 1)
        stats_ref[...] = jnp.concatenate([s, sq], axis=1).reshape(1, 1, Cout, 2)

    # ---- Kernel 2: recompute conv tile, apply folded BN + ReLU -------------
    def apply_kernel(xa_ref, xb_ref, wo_ref, w_ref, scale_ref, shift_ref, o_ref):
        y = conv_tile(xa_ref, xb_ref, wo_ref, w_ref)
        o_ref[0] = jnp.maximum(y * scale_ref[...] + shift_ref[...], 0.0)

    # ---- BlockSpecs ---------------------------------------------------------
    spec_a = pl.BlockSpec((1, Cin, tm), lambda n, i: (n, 0, i))
    spec_b = pl.BlockSpec((1, Cin, ts), lambda n, i: (n, 0, (i + 1) * step_blocks))
    spec_wo = pl.BlockSpec((1, tm), lambda n, i: (0, i))
    spec_w = pl.BlockSpec((kh * kw, Cout, Cin), lambda n, i: (0, 0, 0),
                          pipeline_mode=pl.Buffered(1))          # grid-invariant

    def spec_cvec():
        return pl.BlockSpec((Cout, 1), lambda n, i: (0, 0),
                            pipeline_mode=pl.Buffered(1))

    cparams = pltpu.CompilerParams(
        dimension_semantics=("parallel", "parallel"),
        vmem_limit_bytes=min(vmem_cap // 2, 96 * 1024 * 1024),
    )

    # ---- Pass 1: partial sums / sums-of-squares -----------------------------
    stats = pl.pallas_call(
        stats_kernel,
        out_shape=jax.ShapeDtypeStruct((N, n_tiles, Cout, 2), jnp.float32),
        grid_spec=pltpu.PrefetchScalarGridSpec(
            num_scalar_prefetch=0,
            grid=grid,
            in_specs=[spec_a, spec_b, spec_wo, spec_w],
            out_specs=pl.BlockSpec((1, 1, Cout, 2), lambda n, i: (n, i, 0, 0)),
        ),
        compiler_params=cparams,
    )(xflat, xflat, wo_arr, w9)

    # ---- BN batch statistics (training semantics, biased variance) ----------
    m_total = float(N * Ho * Wo)
    sums = jnp.sum(stats[..., 0], axis=(0, 1))          # (Cout,)  sum of conv (no bias)
    sqs = jnp.sum(stats[..., 1], axis=(0, 1))           # (Cout,)
    mean_nb = sums / m_total
    # NOTE: single-pass E[x^2]-E[x]^2 in f32 (clamped); variance is translation
    # invariant so the conv bias cancels exactly.  bf16 matmul operands mean the
    # stats match PyTorch's f32 conv only to bf16 accuracy (intentional).
    var = jnp.maximum(sqs / m_total - mean_nb * mean_nb, 0.0)
    invstd = jax.lax.rsqrt(var + eps)
    scale_vec = gamma.astype(jnp.float32) * invstd
    # y_out = (conv + bias - mean) * g/std + beta, mean = mean_nb + bias
    #       = conv * scale + (beta - mean_nb * scale)
    shift_vec = beta.astype(jnp.float32) - mean_nb * scale_vec
    scale = scale_vec.reshape(Cout, 1)
    shift = shift_vec.reshape(Cout, 1)

    # ---- Pass 2: fused conv + BN + ReLU, compact lane-dense NCHW output -----
    out = pl.pallas_call(
        apply_kernel,
        out_shape=jax.ShapeDtypeStruct((N, Cout, n_pos), jnp.float32),
        grid_spec=pltpu.PrefetchScalarGridSpec(
            num_scalar_prefetch=0,
            grid=grid,
            in_specs=[spec_a, spec_b, spec_wo, spec_w, spec_cvec(), spec_cvec()],
            out_specs=pl.BlockSpec((1, Cout, tm), lambda n, i: (n, 0, i)),
        ),
        compiler_params=cparams,
    )(xflat, xflat, wo_arr, w9, scale, shift)

    return out.reshape(N, Cout, Ho, Wo)


if __name__ == "__main__":
    # Conv_UP_Block(input=4, output=8, kernel=3, stride=1, padding=1)
    N, Cin, H, W = 2, 4, 16, 16
    Cout, kh, kw = 8, 3, 3
    stride, padding = 1, 1

    key = jax.random.PRNGKey(0)
    kx, kw_, kb = jax.random.split(key, 3)

    x = jax.random.normal(kx, (N, Cin, H, W), dtype=jnp.float32)

    # deterministic parameter init (kaiming-uniform-like scale), PyTorch layout
    fan_in = Cin * kh * kw
    bound = 1.0 / (fan_in ** 0.5)
    weight = jax.random.uniform(kw_, (Cout, Cin, kh, kw), jnp.float32,
                                minval=-bound, maxval=bound)
    bias = jax.random.uniform(kb, (Cout,), jnp.float32,
                              minval=-bound, maxval=bound)
    gamma = jnp.ones((Cout,), jnp.float32)   # BatchNorm2d weight init
    beta = jnp.zeros((Cout,), jnp.float32)   # BatchNorm2d bias init

    out = conv_up_block_forward(x, weight, bias, gamma, beta,
                                stride=stride, padding=padding)
    jax.block_until_ready(out)
    assert out.shape == (N, Cout, 2 * H, 2 * W)
    print("KERNEL_OK")
</pallas_src>

<mosaic_0001>
module attributes {stable_mosaic.version = 11 : i64} {
  func.func @stats_kernel(%arg0: i32, %arg1: i32, %arg2: memref<1x4x256xbf16, #tpu.memory_space<vmem>>, %arg3: memref<1x4x128xbf16, #tpu.memory_space<vmem>>, %arg4: memref<1x256xf32, #tpu.memory_space<vmem>>, %arg5: memref<9x8x4xbf16, #tpu.memory_space<vmem>>, %arg6: memref<1x1x8x2xf32, #tpu.memory_space<vmem>>) attributes {dimension_semantics = [#tpu.dimension_semantics<parallel>, #tpu.dimension_semantics<parallel>], iteration_bounds = array<i64: 2, 4>, scalar_prefetch = 0 : i64, scratch_operands = 0 : i64, tpu.core_type = #tpu.core_type<tc>, window_params = [{transform_indices = @transform_0, window_bounds = array<i64: 1, 4, 256>}, {transform_indices = @transform_1, window_bounds = array<i64: 1, 4, 128>}, {transform_indices = @transform_2, window_bounds = array<i64: 1, 256>}, {pipeline_mode = #tpu.pipeline_mode<synchronous>, transform_indices = @transform_3, window_bounds = array<i64: 9, 8, 4>}, {transform_indices = @transform_4, window_bounds = array<i64: 1, 1, 8, 2>}]} {
    %c0 = arith.constant 0 : index
    %c0_0 = arith.constant 0 : index
    %c0_1 = arith.constant 0 : index
    %0 = vector.load %arg2[%c0, %c0_0, %c0_1] : memref<1x4x256xbf16, #tpu.memory_space<vmem>>, vector<1x4x256xbf16>
    %1 = vector.shape_cast %0 : vector<1x4x256xbf16> to vector<4x256xbf16>
    %c0_2 = arith.constant 0 : index
    %c0_3 = arith.constant 0 : index
    %c0_4 = arith.constant 0 : index
    %2 = vector.load %arg3[%c0_2, %c0_3, %c0_4] : memref<1x4x128xbf16, #tpu.memory_space<vmem>>, vector<1x4x128xbf16>
    %3 = vector.shape_cast %2 : vector<1x4x128xbf16> to vector<4x128xbf16>
    %4 = tpu.concatenate %1, %3 in 1 : vector<4x256xbf16>, vector<4x128xbf16> -> vector<4x384xbf16>
    %c0_5 = arith.constant 0 : index
    %c0_6 = arith.constant 0 : index
    %5 = vector.load %arg4[%c0_5, %c0_6] : memref<1x256xf32, #tpu.memory_space<vmem>>, vector<1x256xf32>
    %cst = arith.constant 0.000000e+00 : f32
    %6 = vector.broadcast %cst : f32 to vector<8x256xf32>
    %cst_7 = arith.constant 0.000000e+00 : f32
    %7 = vector.broadcast %cst_7 : f32 to vector<8x256xf32>
    %c0_8 = arith.constant 0 : index
    %c0_9 = arith.constant 0 : index
    %c0_10 = arith.constant 0 : index
    %8 = vector.load %arg5[%c0_8, %c0_9, %c0_10] : memref<9x8x4xbf16, #tpu.memory_space<vmem>>, vector<1x8x4xbf16>
    %9 = vector.shape_cast %8 : vector<1x8x4xbf16> to vector<8x4xbf16>
    %10 = vector.extract_strided_slice %4 {offsets = [0, 31], sizes = [4, 256], strides = [1, 1]} : vector<4x384xbf16> to vector<4x256xbf16>
    %cst_11 = arith.constant dense<0.000000e+00> : vector<8x256xf32>
    %11 = tpu.matmul %9, %10, %cst_11 {dimension_numbers = #tpu.dot_dimension_numbers<[1], [0], [0], [1], [0, 0, 1, 1], [], []>} : vector<8x4xbf16>, vector<4x256xbf16>, vector<8x256xf32> -> vector<8x256xf32>
    %12 = arith.addf %7, %11 : vector<8x256xf32>
    %c3 = arith.constant 3 : index
    %c0_12 = arith.constant 0 : index
    %c0_13 = arith.constant 0 : index
    %13 = vector.load %arg5[%c3, %c0_12, %c0_13] : memref<9x8x4xbf16, #tpu.memory_space<vmem>>, vector<1x8x4xbf16>
    %14 = vector.shape_cast %13 : vector<1x8x4xbf16> to vector<8x4xbf16>
    %15 = vector.extract_strided_slice %4 {offsets = [0, 63], sizes = [4, 256], strides = [1, 1]} : vector<4x384xbf16> to vector<4x256xbf16>
    %cst_14 = arith.constant dense<0.000000e+00> : vector<8x256xf32>
    %16 = tpu.matmul %14, %15, %cst_14 {dimension_numbers = #tpu.dot_dimension_numbers<[1], [0], [0], [1], [0, 0, 1, 1], [], []>} : vector<8x4xbf16>, vector<4x256xbf16>, vector<8x256xf32> -> vector<8x256xf32>
    %17 = arith.addf %12, %16 : vector<8x256xf32>
    %c6 = arith.constant 6 : index
    %c0_15 = arith.constant 0 : index
    %c0_16 = arith.constant 0 : index
    %18 = vector.load %arg5[%c6, %c0_15, %c0_16] : memref<9x8x4xbf16, #tpu.memory_space<vmem>>, vector<1x8x4xbf16>
    %19 = vector.shape_cast %18 : vector<1x8x4xbf16> to vector<8x4xbf16>
    %20 = vector.extract_strided_slice %4 {offsets = [0, 95], sizes = [4, 256], strides = [1, 1]} : vector<4x384xbf16> to vector<4x256xbf16>
    %cst_17 = arith.constant dense<0.000000e+00> : vector<8x256xf32>
    %21 = tpu.matmul %19, %20, %cst_17 {dimension_numbers = #tpu.dot_dimension_numbers<[1], [0], [0], [1], [0, 0, 1, 1], [], []>} : vector<8x4xbf16>, vector<4x256xbf16>, vector<8x256xf32> -> vector<8x256xf32>
    %22 = arith.addf %17, %21 : vector<8x256xf32>
    %cst_18 = arith.constant 1.000000e+00 : f32
    %23 = vector.broadcast %cst_18 : f32 to vector<1x256xf32>
    %24 = arith.cmpf oge, %5, %23 : vector<1x256xf32>
    %25 = arith.extui %24 : vector<1x256xi1> to vector<1x256xi32>
    %26 = arith.sitofp %25 : vector<1x256xi32> to vector<1x256xf32>
    %27 = vector.broadcast %26 : vector<1x256xf32> to vector<8x256xf32>
    %28 = arith.mulf %22, %27 : vector<8x256xf32>
    %29 = arith.addf %6, %28 : vector<8x256xf32>
    %cst_19 = arith.constant 0.000000e+00 : f32
    %30 = vector.broadcast %cst_19 : f32 to vector<8x256xf32>
    %c1 = arith.constant 1 : index
    %c0_20 = arith.constant 0 : index
    %c0_21 = arith.constant 0 : index
    %31 = vector.load %arg5[%c1, %c0_20, %c0_21] : memref<9x8x4xbf16, #tpu.memory_space<vmem>>, vector<1x8x4xbf16>
    %32 = vector.shape_cast %31 : vector<1x8x4xbf16> to vector<8x4xbf16>
    %33 = vector.extract_strided_slice %4 {offsets = [0, 32], sizes = [4, 256], strides = [1, 1]} : vector<4x384xbf16> to vector<4x256xbf16>
    %cst_22 = arith.constant dense<0.000000e+00> : vector<8x256xf32>
    %34 = tpu.matmul %32, %33, %cst_22 {dimension_numbers = #tpu.dot_dimension_numbers<[1], [0], [0], [1], [0, 0, 1, 1], [], []>} : vector<8x4xbf16>, vector<4x256xbf16>, vector<8x256xf32> -> vector<8x256xf32>
    %35 = arith.addf %30, %34 : vector<8x256xf32>
    %c4 = arith.constant 4 : index
    %c0_23 = arith.constant 0 : index
    %c0_24 = arith.constant 0 : index
    %36 = vector.load %arg5[%c4, %c0_23, %c0_24] : memref<9x8x4xbf16, #tpu.memory_space<vmem>>, vector<1x8x4xbf16>
    %37 = vector.shape_cast %36 : vector<1x8x4xbf16> to vector<8x4xbf16>
    %38 = vector.extract_strided_slice %4 {offsets = [0, 64], sizes = [4, 256], strides = [1, 1]} : vector<4x384xbf16> to vector<4x256xbf16>
    %cst_25 = arith.constant dense<0.000000e+00> : vector<8x256xf32>
    %39 = tpu.matmul %37, %38, %cst_25 {dimension_numbers = #tpu.dot_dimension_numbers<[1], [0], [0], [1], [0, 0, 1, 1], [], []>} : vector<8x4xbf16>, vector<4x256xbf16>, vector<8x256xf32> -> vector<8x256xf32>
    %40 = arith.addf %35, %39 : vector<8x256xf32>
    %c7 = arith.constant 7 : index
    %c0_26 = arith.constant 0 : index
    %c0_27 = arith.constant 0 : index
    %41 = vector.load %arg5[%c7, %c0_26, %c0_27] : memref<9x8x4xbf16, #tpu.memory_space<vmem>>, vector<1x8x4xbf16>
    %42 = vector.shape_cast %41 : vector<1x8x4xbf16> to vector<8x4xbf16>
    %43 = vector.extract_strided_slice %4 {offsets = [0, 96], sizes = [4, 256], strides = [1, 1]} : vector<4x384xbf16> to vector<4x256xbf16>
    %cst_28 = arith.constant dense<0.000000e+00> : vector<8x256xf32>
    %44 = tpu.matmul %42, %43, %cst_28 {dimension_numbers = #tpu.dot_dimension_numbers<[1], [0], [0], [1], [0, 0, 1, 1], [], []>} : vector<8x4xbf16>, vector<4x256xbf16>, vector<8x256xf32> -> vector<8x256xf32>
    %45 = arith.addf %40, %44 : vector<8x256xf32>
    %46 = arith.addf %29, %45 : vector<8x256xf32>
    %cst_29 = arith.constant 0.000000e+00 : f32
    %47 = vector.broadcast %cst_29 : f32 to vector<8x256xf32>
    %c2 = arith.constant 2 : index
    %c0_30 = arith.constant 0 : index
    %c0_31 = arith.constant 0 : index
    %48 = vector.load %arg5[%c2, %c0_30, %c0_31] : memref<9x8x4xbf16, #tpu.memory_space<vmem>>, vector<1x8x4xbf16>
    %49 = vector.shape_cast %48 : vector<1x8x4xbf16> to vector<8x4xbf16>
    %50 = vector.extract_strided_slice %4 {offsets = [0, 33], sizes = [4, 256], strides = [1, 1]} : vector<4x384xbf16> to vector<4x256xbf16>
    %cst_32 = arith.constant dense<0.000000e+00> : vector<8x256xf32>
    %51 = tpu.matmul %49, %50, %cst_32 {dimension_numbers = #tpu.dot_dimension_numbers<[1], [0], [0], [1], [0, 0, 1, 1], [], []>} : vector<8x4xbf16>, vector<4x256xbf16>, vector<8x256xf32> -> vector<8x256xf32>
    %52 = arith.addf %47, %51 : vector<8x256xf32>
    %c5 = arith.constant 5 : index
    %c0_33 = arith.constant 0 : index
    %c0_34 = arith.constant 0 : index
    %53 = vector.load %arg5[%c5, %c0_33, %c0_34] : memref<9x8x4xbf16, #tpu.memory_space<vmem>>, vector<1x8x4xbf16>
    %54 = vector.shape_cast %53 : vector<1x8x4xbf16> to vector<8x4xbf16>
    %55 = vector.extract_strided_slice %4 {offsets = [0, 65], sizes = [4, 256], strides = [1, 1]} : vector<4x384xbf16> to vector<4x256xbf16>
    %cst_35 = arith.constant dense<0.000000e+00> : vector<8x256xf32>
    %56 = tpu.matmul %54, %55, %cst_35 {dimension_numbers = #tpu.dot_dimension_numbers<[1], [0], [0], [1], [0, 0, 1, 1], [], []>} : vector<8x4xbf16>, vector<4x256xbf16>, vector<8x256xf32> -> vector<8x256xf32>
    %57 = arith.addf %52, %56 : vector<8x256xf32>
    %c8 = arith.constant 8 : index
    %c0_36 = arith.constant 0 : index
    %c0_37 = arith.constant 0 : index
    %58 = vector.load %arg5[%c8, %c0_36, %c0_37] : memref<9x8x4xbf16, #tpu.memory_space<vmem>>, vector<1x8x4xbf16>
    %59 = vector.shape_cast %58 : vector<1x8x4xbf16> to vector<8x4xbf16>
    %60 = vector.extract_strided_slice %4 {offsets = [0, 97], sizes = [4, 256], strides = [1, 1]} : vector<4x384xbf16> to vector<4x256xbf16>
    %cst_38 = arith.constant dense<0.000000e+00> : vector<8x256xf32>
    %61 = tpu.matmul %59, %60, %cst_38 {dimension_numbers = #tpu.dot_dimension_numbers<[1], [0], [0], [1], [0, 0, 1, 1], [], []>} : vector<8x4xbf16>, vector<4x256xbf16>, vector<8x256xf32> -> vector<8x256xf32>
    %62 = arith.addf %57, %61 : vector<8x256xf32>
    %cst_39 = arith.constant 3.100000e+01 : f32
    %63 = vector.broadcast %cst_39 : f32 to vector<1x256xf32>
    %64 = arith.cmpf olt, %5, %63 : vector<1x256xf32>
    %65 = arith.extui %64 : vector<1x256xi1> to vector<1x256xi32>
    %66 = arith.sitofp %65 : vector<1x256xi32> to vector<1x256xf32>
    %67 = vector.broadcast %66 : vector<1x256xf32> to vector<8x256xf32>
    %68 = arith.mulf %62, %67 : vector<8x256xf32>
    %69 = arith.addf %46, %68 : vector<8x256xf32>
    %c0_40 = arith.constant 0 : index
    %c0_41 = arith.constant 0 : index
    %70 = vector.load %arg4[%c0_40, %c0_41] : memref<1x256xf32, #tpu.memory_space<vmem>>, vector<1x256xf32>
    %cst_42 = arith.constant 0.000000e+00 : f32
    %71 = vector.broadcast %cst_42 : f32 to vector<1x256xf32>
    %72 = arith.cmpf oge, %70, %71 : vector<1x256xf32>
    %73 = arith.extui %72 : vector<1x256xi1> to vector<1x256xi32>
    %74 = arith.sitofp %73 : vector<1x256xi32> to vector<1x256xf32>
    %75 = vector.broadcast %74 : vector<1x256xf32> to vector<8x256xf32>
    %76 = arith.mulf %69, %75 : vector<8x256xf32>
    %cst_43 = arith.constant dense<0.000000e+00> : vector<8xf32>
    %77 = vector.multi_reduction <add>, %76, %cst_43 [1] : vector<8x256xf32> to vector<8xf32>
    %78 = vector.shape_cast %77 : vector<8xf32> to vector<8x1xf32>
    %79 = arith.mulf %76, %76 : vector<8x256xf32>
    %cst_44 = arith.constant dense<0.000000e+00> : vector<8xf32>
    %80 = vector.multi_reduction <add>, %79, %cst_44 [1] : vector<8x256xf32> to vector<8xf32>
    %81 = vector.shape_cast %80 : vector<8xf32> to vector<8x1xf32>
    %82 = tpu.concatenate %78, %81 in 1 : vector<8x1xf32>, vector<8x1xf32> -> vector<8x2xf32>
    %83 = vector.shape_cast %82 : vector<8x2xf32> to vector<1x1x8x2xf32>
    %c0_45 = arith.constant 0 : index
    %c0_46 = arith.constant 0 : index
    %c0_47 = arith.constant 0 : index
    %c0_48 = arith.constant 0 : index
    %84 = vector.load %arg6[%c0_45, %c0_46, %c0_47, %c0_48] : memref<1x1x8x2xf32, #tpu.memory_space<vmem>>, vector<1x1x8x2xf32>
    tpu.vector_store %arg6[%c0_45, %c0_46, %c0_47, %c0_48], %83 {strides = array<i32>} : memref<1x1x8x2xf32, #tpu.memory_space<vmem>>, vector<1x1x8x2xf32>,
    return
  }
  func.func @transform_0(%arg0: i32, %arg1: i32) -> (i32, i32, i32) {
    %c0_i32 = arith.constant 0 : i32
    %c0_i32_0 = arith.constant 0 : i32
    return %arg0, %c0_i32, %arg1 : i32, i32, i32
  }
  func.func @transform_1(%arg0: i32, %arg1: i32) -> (i32, i32, i32) {
    %c1_i32 = arith.constant 1 : i32
    %0 = arith.addi %arg1, %c1_i32 : i32
    %c2_i32 = arith.constant 2 : i32
    %1 = arith.muli %0, %c2_i32 : i32
    %c0_i32 = arith.constant 0 : i32
    %c0_i32_0 = arith.constant 0 : i32
    return %arg0, %c0_i32, %1 : i32, i32, i32
  }
  func.func @transform_2(%arg0: i32, %arg1: i32) -> (i32, i32) {
    %c0_i32 = arith.constant 0 : i32
    %c0_i32_0 = arith.constant 0 : i32
    return %c0_i32, %arg1 : i32, i32
  }
  func.func @transform_3(%arg0: i32, %arg1: i32) -> (i32, i32, i32) {
    %c0_i32 = arith.constant 0 : i32
    %c0_i32_0 = arith.constant 0 : i32
    %c0_i32_1 = arith.constant 0 : i32
    %c0_i32_2 = arith.constant 0 : i32
    return %c0_i32, %c0_i32_0, %c0_i32_1 : i32, i32, i32
  }
  func.func @transform_4(%arg0: i32, %arg1: i32) -> (i32, i32, i32, i32) {
    %c0_i32 = arith.constant 0 : i32
    %c0_i32_0 = arith.constant 0 : i32
    %c0_i32_1 = arith.constant 0 : i32
    return %arg0, %arg1, %c0_i32, %c0_i32_0 : i32, i32, i32, i32
  }
}

</mosaic_0001>

<llo_original>
// kernel: tpu_custom_call.1
$region0: #{tpu_custom_call.1}
  #allocation0 [shape = 'u32[]', space=smem, size = 0x4, offset = 0x4, fixed_abs, tag = 'smem constant byte address 0x4 - core index']
  #allocation1 [shape = 'u32[144,128]{1,0:T(1,128)}', space=vmem, size = 0x12000, scoped, tag = 'internal scratch']
  %s0 = inlined_call_operand.vmem [shape: bf16[2,4,1152], index: 0, kind: input, shape index: {}]
  %s1 = inlined_call_operand.hbm [shape: bf16[2,4,1152], index: 1, kind: input, shape index: {}]
  %s2 = inlined_call_operand.vmem [shape: f32[1,1024], index: 2, kind: input, shape index: {}]
  %s3 = inlined_call_operand.vmem [shape: bf16[9,8,4], index: 3, kind: input, shape index: {}]
  %s4 = inlined_call_operand.vmem [shape: f32[2,4,8,2], index: 4, kind: output, shape index: {}]
  %s5 = sld [smem:[#allocation0]]
  $region53: #{tpu_custom_call.1} parent=0
    _
  %s7 = ssub.s32 1, %s5
  %s8 = scalar_select 0, %s7, %s5
  $region1: #{tpu_custom_call.1} parent=0
    #allocation2 [shape = 'u8[2048]{0}', space=vmem, size = 0x800, scoped, tag = 'input window, operand 1']
    #allocation3 [shape = 's32[2]{0}', space=sflag, size = 0x8, scoped, tag = 'scoped memory for tpu_custom_call.1']
    %9 = vsyncpa [#allocation3], 0
    %s10 = scalar_lea.sflag [#allocation3], 1
    %11 = vsyncpa %s10, 0
    loop: start=0, step=1, limit=10
    $region2: #{tpu_custom_call.1} parent=1 // loop_pre_header
      _
    $region3: #{tpu_custom_call.1} parent=1 // loop_header
      %s13 = sphi 0, %s17
      %p14 = scmp.ge.s32.totalorder %s13, 10
      %s20 = sphi 0, %s32
      %s21 = sphi 0, %s28
      %s22 = sphi 0, %s20
      %s23 = sphi 0, %s21
      %s24 = sphi 0, %s22
      %s25 = sphi 0, %s23
      %s37 = sphi 0, %s39
      %s40 = sphi 0, %s37
      %s41 = sphi 0, %s40
      %s57 = sphi 0, %s41
      %s69 = sphi 0, %s71
      %s72 = sphi 0, %s69
      %s73 = sphi 0, %s72
      %s89 = sphi 0, %s73
      %s95 = sphi 0, %s97
      %s98 = sphi 0, %s95
      %s99 = sphi 0, %s98
      %s115 = sphi 0, %s99
      %s119 = sphi 0, %s119
      %s121 = sphi 0, %s119
      %s122 = sphi 0, %s121
      %s136 = sphi 0, %s122
      %s144 = sphi 0, %s146
      %s147 = sphi 0, %s144
      %s148 = sphi 0, %s147
      %s164 = sphi 0, %s148
    $region4: #{tpu_custom_call.1} parent=1 // loop_header_branch
      %16 = sbr.rel (%p14) target = $region8
    $region5: #{tpu_custom_call.1} parent=1 // loop_body
      %s18 = ssub.s32 %s13, 1
      %s19 = ssub.s32 %s13, 2
      %s26 = sadd.s32 1, %s21
      %p27 = scmp.ge.s32.totalorder %s26, 4
      %s28 = scalar_select %p27, 0, %s26
      %s29 = sadd.s32 1, %s20
      %s30 = scalar_select %p27, %s29, %s20
      %p31 = scmp.ge.s32.totalorder %s30, 2
      %s32 = scalar_select %p31, 0, %s30
      %s33 = ssub.s32 %s20, %s32
      %s34 = ssub.s32 %s21, %s28
      %s35 = sor.u32 %s33, %s34
      %p36 = scmp.eq.s32.totalorder %s35, 0
      %s38 = sadd.s32 %s37, 1
      %s39 = scalar_select %p36, %s37, %s38
      %p42 = pneg %p36
      %p43 = scmp.eq.s32.totalorder %s13, 7
      %p44 = por %p42, %p43
      %p45 = scmp.ne.s32.totalorder %s37, %s40
      %p46 = scmp.eq.s32.totalorder %s13, 0
      %p47 = por %p45, %p46
      %p48 = scmp.ne.s32.totalorder %s37, %s40
      %p49 = scmp.eq.s32.totalorder %s18, 7
      %p50 = por %p48, %p49
      %p51 = scmp.ne.s32.totalorder %s40, %s41
      %p52 = scmp.eq.s32.totalorder %s18, 0
      %p53 = por %p51, %p52
      %p54 = scmp.ne.s32.totalorder %s40, %s41
      %p55 = scmp.eq.s32.totalorder %s19, 7
      %p56 = por %p54, %p55
      %p58 = scmp.ne.s32.totalorder %s41, %s57
      %p59 = scmp.eq.s32.totalorder %s19, 0
      %p60 = por %p58, %p59
      %s61 = sadd.s32 %s21, 1
      %s62 = smul.u32 %s61, 2
      %s63 = sadd.s32 %s28, 1
      %s64 = smul.u32 %s63, 2
      %s65 = ssub.s32 %s20, %s32
      %s66 = ssub.s32 %s62, %s64
      %s67 = sor.u32 %s65, %s66
      %p68 = scmp.eq.s32.totalorder %s67, 0
      %s70 = sadd.s32 %s69, 1
      %s71 = scalar_select %p68, %s69, %s70
      %p74 = pneg %p68
      %p75 = scmp.eq.s32.totalorder %s13, 7
      %p76 = por %p74, %p75
      %p77 = scmp.ne.s32.totalorder %s69, %s72
      %p78 = scmp.eq.s32.totalorder %s13, 0
      %p79 = por %p77, %p78
      %p80 = scmp.ne.s32.totalorder %s69, %s72
      %p81 = scmp.eq.s32.totalorder %s18, 7
      %p82 = por %p80, %p81
      %p83 = scmp.ne.s32.totalorder %s72, %s73
      %p84 = scmp.eq.s32.totalorder %s18, 0
      %p85 = por %p83, %p84
      %p86 = scmp.ne.s32.totalorder %s72, %s73
      %p87 = scmp.eq.s32.totalorder %s19, 7
      %p88 = por %p86, %p87
      %p90 = scmp.ne.s32.totalorder %s73, %s89
      %p91 = scmp.eq.s32.totalorder %s19, 0
      %p92 = por %p90, %p91
      %s93 = ssub.s32 %s21, %s28
      %p94 = scmp.eq.s32.totalorder %s93, 0
      %s96 = sadd.s32 %s95, 1
      %s97 = scalar_select %p94, %s95, %s96
      %p100 = pneg %p94
      %p101 = scmp.eq.s32.totalorder %s13, 7
      %p102 = por %p100, %p101
      %p103 = scmp.ne.s32.totalorder %s95, %s98
      %p104 = scmp.eq.s32.totalorder %s13, 0
      %p105 = por %p103, %p104
      %p106 = scmp.ne.s32.totalorder %s95, %s98
      %p107 = scmp.eq.s32.totalorder %s18, 7
      %p108 = por %p106, %p107
      %p109 = scmp.ne.s32.totalorder %s98, %s99
      %p110 = scmp.eq.s32.totalorder %s18, 0
      %p111 = por %p109, %p110
      %p112 = scmp.ne.s32.totalorder %s98, %s99
      %p113 = scmp.eq.s32.totalorder %s19, 7
      %p114 = por %p112, %p113
      %p116 = scmp.ne.s32.totalorder %s99, %s115
      %p117 = scmp.eq.s32.totalorder %s19, 0
      %p118 = por %p116, %p117
      %s120 = sadd.s32 %s119, 1
      %p123 = scmp.eq.s32.totalorder %s13, 7
      %p124 = scmp.ne.s32.totalorder %s119, %s121
      %p125 = scmp.eq.s32.totalorder %s13, 0
      %p126 = por %p124, %p125
      %p127 = scmp.ne.s32.totalorder %s119, %s121
      %p128 = scmp.eq.s32.totalorder %s18, 7
      %p129 = por %p127, %p128
      %p130 = scmp.ne.s32.totalorder %s121, %s122
      %p131 = scmp.eq.s32.totalorder %s18, 0
      %p132 = por %p130, %p131
      %p133 = scmp.ne.s32.totalorder %s121, %s122
      %p134 = scmp.eq.s32.totalorder %s19, 7
      %p135 = por %p133, %p134
      %p137 = scmp.ne.s32.totalorder %s122, %s136
      %p138 = scmp.eq.s32.totalorder %s19, 0
      %p139 = por %p137, %p138
      %s140 = ssub.s32 %s20, %s32
      %s141 = ssub.s32 %s21, %s28
      %s142 = sor.u32 %s140, %s141
      %p143 = scmp.eq.s32.totalorder %s142, 0
      %s145 = sadd.s32 %s144, 1
      %s146 = scalar_select %p143, %s144, %s145
      %p149 = pneg %p143
      %p150 = scmp.eq.s32.totalorder %s13, 7
      %p151 = por %p149, %p150
      %p152 = scmp.ne.s32.totalorder %s144, %s147
      %p153 = scmp.eq.s32.totalorder %s13, 0
      %p154 = por %p152, %p153
      %p155 = scmp.ne.s32.totalorder %s144, %s147
      %p156 = scmp.eq.s32.totalorder %s18, 7
      %p157 = por %p155, %p156
      %p158 = scmp.ne.s32.totalorder %s147, %s148
      %p159 = scmp.eq.s32.totalorder %s18, 0
      %p160 = por %p158, %p159
      %p161 = scmp.ne.s32.totalorder %s147, %s148
      %p162 = scmp.eq.s32.totalorder %s19, 7
      %p163 = por %p161, %p162
      %p165 = scmp.ne.s32.totalorder %s148, %s164
      %p166 = scmp.eq.s32.totalorder %s19, 0
      %p167 = por %p165, %p166
      %p168 = scmp.le.s32.totalorder 1, %s13
      %p169 = scmp.lt.s32.totalorder %s13, 9
      %p170 = pnand %p168, %p169
      %p171 = pneg %p170
      // Predicated region
      $region9: #{tpu_custom_call.1} parent=5 // pred_check
        _
      $region10: #{tpu_custom_call.1} parent=5 // pred_check_branch
        %173 = sbr.rel (%p170) target = $region12
      $region11: #{tpu_custom_call.1} parent=5 // pred_region
        %s174 = ssub.s32 %s13, 1
        // Predicated region
        $region13: #{tpu_custom_call.1} parent=11 // pred_check
          %p175 = pneg %p132
        $region14: #{tpu_custom_call.1} parent=11 // pred_check_branch
          %177 = sbr.rel (%p175) target = $region16
        $region15: #{tpu_custom_call.1} parent=11 // pred_region
          _
        $region16: #{tpu_custom_call.1} parent=11 // pred_fallthru
          _
      $region12: #{tpu_custom_call.1} parent=5 // pred_fallthru
        _
      %p178 = scmp.lt.s32.totalorder %s13, 8
      // Predicated region
      $region17: #{tpu_custom_call.1} parent=5 // pred_check
        %p179 = pneg %p178
      $region18: #{tpu_custom_call.1} parent=5 // pred_check_branch
        %181 = sbr.rel (%p179) target = $region20
      $region19: #{tpu_custom_call.1} parent=5 // pred_region
        // Predicated region
        $region21: #{tpu_custom_call.1} parent=19 // pred_check
          %p182 = pneg %p47
        $region22: #{tpu_custom_call.1} parent=19 // pred_check_branch
          %184 = sbr.rel (%p182) target = $region24
        $region23: #{tpu_custom_call.1} parent=19 // pred_region
          %s185 = smul.u32 2, %s21
          %s186 = ssub.s32 9, %s185
          %p187 = scmp.lt.s32.totalorder %s186, 2
          %s188 = scalar_select %p187, %s186, 2
          %s189 = smul.u32 32, %s188
          %p190 = scmp.lt.s32.totalorder %s20, 1
          %s191 = scalar_select %p190, %s20, 1
          %p192 = scmp.lt.s32.totalorder %s185, 8
          %s193 = scalar_select %p192, %s185, 8
          %s194 = smul.addr %s191, 9
          %s195 = sadd.s32 %s193, %s194
          %s196 = smul.addr %s195, 2
          %s197 = scalar_lea.vmem %s0, %s196
          %s198 = smul.u32 2, %s21
          %s199 = ssub.s32 9, %s198
          %p200 = scmp.lt.s32.totalorder %s199, 2
          %s201 = scalar_select %p200, %s199, 2
          %s202 = smul.u32 32, %s201
        $region24: #{tpu_custom_call.1} parent=19 // pred_fallthru
          _
        // Predicated region
        $region25: #{tpu_custom_call.1} parent=19 // pred_check
          %p203 = pneg %p79
        $region26: #{tpu_custom_call.1} parent=19 // pred_check_branch
          %205 = sbr.rel (%p203) target = $region28
        $region27: #{tpu_custom_call.1} parent=19 // pred_region
          %s206 = sand.u32 %s69, 1
          %s207 = scalar_lea.sflag [#allocation3], %s206
          %s208 = sand.u32 %s69, 1
          %s209 = smul.addr %s208, 2
          %s210 = scalar_lea.vmem [#allocation2], %s209
          %s211 = sadd.s32 %s21, 1
          %s212 = smul.u32 %s211, 2
          %s214 = ssub.s32 32, 32
          %215 = vsyncadd %s207, %s214
          %s216 = smul.addr %s20, 9
          %s217 = sadd.s32 %s212, %s216
          %s218 = smul.addr %s217, 32
          %s219 = scalar_lea.hbm %s1, %s218
          %s221 = sshll.u32 %s210, 4
          %s222 = int_to_ptr.vmem [resolvable:$true] %s221
          %224 = dma.hbm_to_vmem [thread:$0]  %s219, 32, %s222, %s207
        $region28: #{tpu_custom_call.1} parent=19 // pred_fallthru
          _
        // Predicated region
        $region29: #{tpu_custom_call.1} parent=19 // pred_check
          %p225 = pneg %p105
        $region30: #{tpu_custom_call.1} parent=19 // pred_check_branch
          %227 = sbr.rel (%p225) target = $region32
        $region31: #{tpu_custom_call.1} parent=19 // pred_region
          %s228 = smul.u32 2, %s21
          %p229 = scmp.lt.s32.totalorder %s228, 7
          %s230 = scalar_select %p229, %s228, 7
          %s231 = scalar_lea.vmem %s2, %s230
          %s232 = smul.u32 2, %s21
        $region32: #{tpu_custom_call.1} parent=19 // pred_fallthru
          _
      $region20: #{tpu_custom_call.1} parent=5 // pred_fallthru
        _
      %p233 = scmp.le.s32.totalorder 1, %s13
      %p234 = scmp.lt.s32.totalorder %s13, 9
      %p235 = pnand %p233, %p234
      %p236 = pneg %p235
      // Predicated region
      $region33: #{tpu_custom_call.1} parent=5 // pred_check
        _
      $region34: #{tpu_custom_call.1} parent=5 // pred_check_branch
        %238 = sbr.rel (%p235) target = $region36
      $region35: #{tpu_custom_call.1} parent=5 // pred_region
        %s239 = ssub.s32 %s13, 1
        %s240 = sand.u32 %s72, 1
        %s241 = scalar_lea.sflag [#allocation3], %s240
        %s242 = sand.u32 %s72, 1
        %s243 = smul.addr %s242, 2
        %s244 = scalar_lea.vmem [#allocation2], %s243
        // Predicated region
        $region37: #{tpu_custom_call.1} parent=35 // pred_check
          %p245 = pneg %p85
        $region38: #{tpu_custom_call.1} parent=35 // pred_check_branch
          %247 = sbr.rel (%p245) target = $region40
        $region39: #{tpu_custom_call.1} parent=35 // pred_region
          %248 = dma.done %s241, 32
        $region40: #{tpu_custom_call.1} parent=35 // pred_fallthru
          _
        %s249 = smul.u32 2, %s23
        %s250 = ssub.s32 9, %s249
        %p251 = scmp.lt.s32.totalorder %s250, 2
        %s252 = scalar_select %p251, %s250, 2
        %s253 = smul.u32 32, %s252
        %p254 = scmp.lt.s32.totalorder %s22, 1
        %s255 = scalar_select %p254, %s22, 1
        %p256 = scmp.lt.s32.totalorder %s249, 8
        %s257 = scalar_select %p256, %s249, 8
        %s258 = smul.addr %s255, 9
        %s259 = sadd.s32 %s257, %s258
        %s260 = smul.addr %s259, 2
        %s261 = scalar_lea.vmem %s0, %s260
        %p262 = pneg %p53
        %p263 = pneg %p50
        %s264 = sand.u32 %s72, 1
        %s265 = scalar_lea.sflag [#allocation3], %s264
        %s266 = sand.u32 %s72, 1
        %s267 = smul.addr %s266, 2
        %s268 = scalar_lea.vmem [#allocation2], %s267
        %p269 = pneg %p85
        %p270 = pneg %p82
        %s271 = smul.u32 2, %s23
        %p272 = scmp.lt.s32.totalorder %s271, 7
        %s273 = scalar_select %p272, %s271, 7
        %s274 = scalar_lea.vmem %s2, %s273
        %p275 = pneg %p111
        %p276 = pneg %p108
        %p277 = pneg %p132
        %p278 = pneg %p129
        %p279 = pneg %p160
        %p280 = pneg %p157
        %p281 = scmp.lt.s32.totalorder %s22, 1
        %s282 = scalar_select %p281, %s22, 1
        %p283 = scmp.lt.s32.totalorder %s23, 3
        %s284 = scalar_select %p283, %s23, 3
        %s285 = smul.addr %s282, 4
        %s286 = sadd.s32 %s284, %s285
        %s287 = smul.addr %s286, 8
        %s288 = scalar_lea.vmem %s4, %s287
        %s289 = smul.u32 2, %s23
        %s290 = ssub.s32 9, %s289
        %p291 = scmp.lt.s32.totalorder %s290, 2
        %s292 = scalar_select %p291, %s290, 2
        %s293 = smul.u32 32, %s292
        %p294 = scmp.lt.s32.totalorder %s22, 1
        %s295 = scalar_select %p294, %s22, 1
        %p296 = scmp.lt.s32.totalorder %s289, 8
        %s297 = scalar_select %p296, %s289, 8
        %s298 = smul.addr %s295, 9
        %s299 = sadd.s32 %s297, %s298
        %s300 = smul.addr %s299, 2
        %s301 = scalar_lea.vmem %s0, %s300
        %s302 = smul.u32 2, %s23
        %s303 = ssub.s32 9, %s302
        %p304 = scmp.lt.s32.totalorder %s303, 2
        %s305 = scalar_select %p304, %s303, 2
        %s306 = smul.u32 32, %s305
        %s307 = sadd.s32 %s23, 1
        %s308 = smul.u32 %s307, 2
        %s309 = smul.u32 2, %s23
        %p310 = scmp.lt.s32.totalorder %s309, 7
        %s311 = scalar_select %p310, %s309, 7
        %s312 = scalar_lea.vmem %s2, %s311
        %s313 = smul.u32 2, %s23
        %p314 = scmp.lt.s32.totalorder %s22, 1
        %s315 = scalar_select %p314, %s22, 1
        %p316 = scmp.lt.s32.totalorder %s23, 3
        %s317 = scalar_select %p316, %s23, 3
        %s318 = smul.addr %s315, 4
        %s319 = sadd.s32 %s317, %s318
        %s320 = smul.addr %s319, 8
        %s321 = scalar_lea.vmem %s4, %s320
        %v323 = vld [vmem:[%s301] sm:$0xf]
        %v324 = vld [vmem:[%s244] sm:$0x3]
        %v327 = vunpack.c.l.s4 1983009808
        %v328 = vunpack.c.0.s8 %v327
        %v329 = vlaneseq
        %v330 = vshrl.u32 %v329, 7
        %v331 = vsub.s32 %v328, %v330
        %v332 = vrot.slane %v323, %v331
        %v333 = vcombine.high %v332, %v332
        %v334 = vld [vmem:[%s312] sm:$0x3]
        %v335 = vld [vmem:[%s3] sm:$0xf]
        %s336 = scalar_lea.vmem %s3, 12
        %v337 = vld [vmem:[%s336] sm:$0xf]
        %339 = vrot.lane.b32.xlu0 %v332, 65
        %v340 = vpop.permute.xlu0 %339
        %341 = vrot.lane.b32.xlu0 %v333, 65
        %v342 = vpop.permute.xlu0 %341
        %343 = vrot.lane.b32.xlu0 %v324, 65
        %v344 = vpop.permute.xlu0 %343
        %vm345 = vcmask 531456
        %v346 = vsel %vm345, %v340, %v342
        %v347 = vsel %vm345, %v342, %v344
        %vm348 = vcmask 31744
        %v350 = vsel %vm348, %v337, 0
        %vm352 = vcmask 1041408
        %v354 = vsel %vm352, %v346, 0
        %v357 = vsel %vm352, %v347, 0
        %359 = vmatprep.subr.bf16.mxu0 %v357
        %360 = vmatpush1.bf16.msra.mxu0 %v354
        %361 = vmatprep.subr.bf16.mxu0 0
        %362 = vmatpush1.bf16.msra.mxu0 0
        %363 = vmatprep.subr.bf16.mxu0 0
        %364 = vmatpush1.bf16.msra.mxu0 0
        %365 = vmatprep.subr.bf16.mxu0 0
        %366 = vmatpush1.bf16.msra.mxu0 0
        %367 = vmatprep.subr.bf16.mxu0 0
        %368 = vmatpush1.bf16.msra.mxu0 0
        %369 = vmatprep.subr.bf16.mxu0 0
        %370 = vmatpush1.bf16.msra.mxu0 0
        %371 = vmatprep.subr.bf16.mxu0 0
        %372 = vmatpush1.bf16.msra.mxu0 0
        %373 = vmatprep.subr.bf16.mxu0 0
        %374 = vmatpush1.bf16.msra.mxu0 0
        %375 = vmatprep.subr.bf16.mxu0 0
        %376 = vmatpush1.bf16.msra.mxu0 0
        %377 = vmatprep.subr.bf16.mxu0 0
        %378 = vmatpush1.bf16.msra.mxu0 0
        %379 = vmatprep.subr.bf16.mxu0 0
        %380 = vmatpush1.bf16.msra.mxu0 0
        %381 = vmatprep.subr.bf16.mxu0 0
        %382 = vmatpush1.bf16.msra.mxu0 0
        %383 = vmatprep.subr.bf16.mxu0 0
        %384 = vmatpush1.bf16.msra.mxu0 0
        %385 = vmatprep.subr.bf16.mxu0 0
        %386 = vmatpush1.bf16.msra.mxu0 0
        %387 = vmatprep.subr.bf16.mxu0 0
        %388 = vmatpush1.bf16.msra.mxu0 0
        %389 = vmatprep.subr.bf16.mxu0 0
        %390 = vmatpush1.bf16.msra.mxu0 0
        %391 = vmatprep.mubr.bf16.mxu0 0
        %392 = vmatmul.mubr.bf16.gmra.mrb[0].mxu0 %v350
        %v393 = vpop.f32.mrb[0].mxu0
        %v394 = vadd.f32 0.0, %v393
        %v395 = vpop.f32.mrb[0].mxu0
        %v396 = vadd.f32 0.0, %v395
        %v397 = vpop.f32.mrb[0].mxu0
        %v398 = vpop.f32.mrb[0].mxu0
        %399 = vdwg.mxu0
        %400 = vrot.lane.b32.xlu0 %v332, 97
        %v401 = vpop.permute.xlu0 %400
        %402 = vrot.lane.b32.xlu0 %v333, 97
        %v403 = vpop.permute.xlu0 %402
        %404 = vrot.lane.b32.xlu0 %v324, 97
        %v405 = vpop.permute.xlu0 %404
        %vm406 = vcmask 793600
        %v407 = vsel %vm406, %v401, %v403
        %v408 = vsel %vm406, %v403, %v405
        %v410 = vsel %vm348, %v335, 0
        %v413 = vsel %vm352, %v407, 0
        %v416 = vsel %vm352, %v408, 0
        %418 = vmatprep.subr.bf16.mxu0 %v416
        %419 = vmatpush1.bf16.msra.mxu0 %v413
        %420 = vmatprep.subr.bf16.mxu0 0
        %421 = vmatpush1.bf16.msra.mxu0 0
        %422 = vmatprep.subr.bf16.mxu0 0
        %423 = vmatpush1.bf16.msra.mxu0 0
        %424 = vmatprep.subr.bf16.mxu0 0
        %425 = vmatpush1.bf16.msra.mxu0 0
        %426 = vmatprep.subr.bf16.mxu0 0
        %427 = vmatpush1.bf16.msra.mxu0 0
        %428 = vmatprep.subr.bf16.mxu0 0
        %429 = vmatpush1.bf16.msra.mxu0 0
        %430 = vmatprep.subr.bf16.mxu0 0
        %431 = vmatpush1.bf16.msra.mxu0 0
        %432 = vmatprep.subr.bf16.mxu0 0
        %433 = vmatpush1.bf16.msra.mxu0 0
        %434 = vmatprep.subr.bf16.mxu0 0
        %435 = vmatpush1.bf16.msra.mxu0 0
        %436 = vmatprep.subr.bf16.mxu0 0
        %437 = vmatpush1.bf16.msra.mxu0 0
        %438 = vmatprep.subr.bf16.mxu0 0
        %439 = vmatpush1.bf16.msra.mxu0 0
        %440 = vmatprep.subr.bf16.mxu0 0
        %441 = vmatpush1.bf16.msra.mxu0 0
        %442 = vmatprep.subr.bf16.mxu0 0
        %443 = vmatpush1.bf16.msra.mxu0 0
        %444 = vmatprep.subr.bf16.mxu0 0
        %445 = vmatpush1.bf16.msra.mxu0 0
        %446 = vmatprep.subr.bf16.mxu0 0
        %447 = vmatpush1.bf16.msra.mxu0 0
        %448 = vmatprep.subr.bf16.mxu0 0
        %449 = vmatpush1.bf16.msra.mxu0 0
        %450 = vmatprep.mubr.bf16.mxu0 0
        %451 = vmatmul.mubr.bf16.gmra.mrb[0].mxu0 %v410
        %v452 = vpop.f32.mrb[0].mxu0
        %v453 = vadd.f32 %v394, %v452
        %v454 = vpop.f32.mrb[0].mxu0
        %v455 = vadd.f32 %v396, %v454
        %v456 = vpop.f32.mrb[0].mxu0
        %v457 = vpop.f32.mrb[0].mxu0
        %458 = vdwg.mxu0
        %s459 = scalar_lea.vmem %s3, 24
        %v460 = vld [vmem:[%s459] sm:$0xf]
        %461 = vrot.lane.b32.xlu0 %v332, 33
        %v462 = vpop.permute.xlu0 %461
        %463 = vrot.lane.b32.xlu0 %v333, 33
        %v464 = vpop.permute.xlu0 %463
        %465 = vrot.lane.b32.xlu0 %v324, 33
        %v466 = vpop.permute.xlu0 %465
        %vm467 = vcmask 269312
        %v468 = vsel %vm467, %v462, %v464
        %v469 = vsel %vm467, %v464, %v466
        %v471 = vsel %vm348, %v460, 0
        %v474 = vsel %vm352, %v468, 0
        %v477 = vsel %vm352, %v469, 0
        %479 = vmatprep.subr.bf16.mxu0 %v477
        %480 = vmatpush1.bf16.msra.mxu0 %v474
        %481 = vmatprep.subr.bf16.mxu0 0
        %482 = vmatpush1.bf16.msra.mxu0 0
        %483 = vmatprep.subr.bf16.mxu0 0
        %484 = vmatpush1.bf16.msra.mxu0 0
        %485 = vmatprep.subr.bf16.mxu0 0
        %486 = vmatpush1.bf16.msra.mxu0 0
        %487 = vmatprep.subr.bf16.mxu0 0
        %488 = vmatpush1.bf16.msra.mxu0 0
        %489 = vmatprep.subr.bf16.mxu0 0
        %490 = vmatpush1.bf16.msra.mxu0 0
        %491 = vmatprep.subr.bf16.mxu0 0
        %492 = vmatpush1.bf16.msra.mxu0 0
        %493 = vmatprep.subr.bf16.mxu0 0
        %494 = vmatpush1.bf16.msra.mxu0 0
        %495 = vmatprep.subr.bf16.mxu0 0
        %496 = vmatpush1.bf16.msra.mxu0 0
        %497 = vmatprep.subr.bf16.mxu0 0
        %498 = vmatpush1.bf16.msra.mxu0 0
        %499 = vmatprep.subr.bf16.mxu0 0
        %500 = vmatpush1.bf16.msra.mxu0 0
        %501 = vmatprep.subr.bf16.mxu0 0
        %502 = vmatpush1.bf16.msra.mxu0 0
        %503 = vmatprep.subr.bf16.mxu0 0
        %504 = vmatpush1.bf16.msra.mxu0 0
        %505 = vmatprep.subr.bf16.mxu0 0
        %506 = vmatpush1.bf16.msra.mxu0 0
        %507 = vmatprep.subr.bf16.mxu0 0
        %508 = vmatpush1.bf16.msra.mxu0 0
        %509 = vmatprep.subr.bf16.mxu0 0
        %510 = vmatpush1.bf16.msra.mxu0 0
        %511 = vmatprep.mubr.bf16.mxu0 0
        %512 = vmatmul.mubr.bf16.gmra.mrb[0].mxu0 %v471
        %v513 = vpop.f32.mrb[0].mxu0
        %v514 = vadd.f32 0.0, %v513
        %v515 = vpop.f32.mrb[0].mxu0
        %v516 = vadd.f32 0.0, %v515
        %v517 = vpop.f32.mrb[0].mxu0
        %v518 = vpop.f32.mrb[0].mxu0
        %519 = vdwg.mxu0
        %v520 = vadd.f32 %v453, %v514
        %v521 = vadd.f32 %v455, %v516
        %vm522 = vcmp.ge.f32.partialorder %v334, 1.0
        %v523 = vsel %vm522, 1, 0
        %v524 = vcvt.s32.f32 %v523
        %v526 = vlaneseq
        %v527 = vshrl.u32 %v526, 7
        %v528 = vsub.s32 0, %v527
        %v529 = vrot.slane %v524, %v528
        %v530 = vlaneseq
        %v531 = vshrl.u32 %v530, 7
        %v532 = vsub.s32 1, %v531
        %v533 = vrot.slane %v524, %v532
        %v536 = vmul.f32 %v520, %v529
        %v537 = vmul.f32 %v521, %v533
        %v538 = vadd.f32 %v536, 0.0
        %v539 = vadd.f32 %v537, 0.0
        %s540 = scalar_lea.vmem %s3, 4
        %v541 = vld [vmem:[%s540] sm:$0xf]
        %s542 = scalar_lea.vmem %s3, 16
        %v543 = vld [vmem:[%s542] sm:$0xf]
        %544 = vrot.lane.b32.xlu0 %v332, 64
        %v545 = vpop.permute.xlu0 %544
        %546 = vrot.lane.b32.xlu0 %v333, 64
        %v547 = vpop.permute.xlu0 %546
        %548 = vrot.lane.b32.xlu0 %v324, 64
        %v549 = vpop.permute.xlu0 %548
        %vm550 = vcmask 523264
        %v551 = vsel %vm550, %v545, %v547
        %v552 = vsel %vm550, %v547, %v549
        %v554 = vsel %vm348, %v543, 0
        %v557 = vsel %vm352, %v551, 0
        %v560 = vsel %vm352, %v552, 0
        %562 = vmatprep.subr.bf16.mxu0 %v560
        %563 = vmatpush1.bf16.msra.mxu0 %v557
        %564 = vmatprep.subr.bf16.mxu0 0
        %565 = vmatpush1.bf16.msra.mxu0 0
        %566 = vmatprep.subr.bf16.mxu0 0
        %567 = vmatpush1.bf16.msra.mxu0 0
        %568 = vmatprep.subr.bf16.mxu0 0
        %569 = vmatpush1.bf16.msra.mxu0 0
        %570 = vmatprep.subr.bf16.mxu0 0
        %571 = vmatpush1.bf16.msra.mxu0 0
        %572 = vmatprep.subr.bf16.mxu0 0
        %573 = vmatpush1.bf16.msra.mxu0 0
        %574 = vmatprep.subr.bf16.mxu0 0
        %575 = vmatpush1.bf16.msra.mxu0 0
        %576 = vmatprep.subr.bf16.mxu0 0
        %577 = vmatpush1.bf16.msra.mxu0 0
        %578 = vmatprep.subr.bf16.mxu0 0
        %579 = vmatpush1.bf16.msra.mxu0 0
        %580 = vmatprep.subr.bf16.mxu0 0
        %581 = vmatpush1.bf16.msra.mxu0 0
        %582 = vmatprep.subr.bf16.mxu0 0
        %583 = vmatpush1.bf16.msra.mxu0 0
        %584 = vmatprep.subr.bf16.mxu0 0
        %585 = vmatpush1.bf16.msra.mxu0 0
        %586 = vmatprep.subr.bf16.mxu0 0
        %587 = vmatpush1.bf16.msra.mxu0 0
        %588 = vmatprep.subr.bf16.mxu0 0
        %589 = vmatpush1.bf16.msra.mxu0 0
        %590 = vmatprep.subr.bf16.mxu0 0
        %591 = vmatpush1.bf16.msra.mxu0 0
        %592 = vmatprep.subr.bf16.mxu0 0
        %593 = vmatpush1.bf16.msra.mxu0 0
        %594 = vmatprep.mubr.bf16.mxu0 0
        %595 = vmatmul.mubr.bf16.gmra.mrb[0].mxu0 %v554
        %v596 = vpop.f32.mrb[0].mxu0
        %v597 = vadd.f32 0.0, %v596
        %v598 = vpop.f32.mrb[0].mxu0
        %v599 = vadd.f32 0.0, %v598
        %v600 = vpop.f32.mrb[0].mxu0
        %v601 = vpop.f32.mrb[0].mxu0
        %602 = vdwg.mxu0
        %603 = vrot.lane.b32.xlu0 %v332, 96
        %v604 = vpop.permute.xlu0 %603
        %605 = vrot.lane.b32.xlu0 %v333, 96
        %v606 = vpop.permute.xlu0 %605
        %607 = vrot.lane.b32.xlu0 %v324, 96
        %v608 = vpop.permute.xlu0 %607
        %vm609 = vcmask 785408
        %v610 = vsel %vm609, %v604, %v606
        %v611 = vsel %vm609, %v606, %v608
        %v613 = vsel %vm348, %v541, 0
        %v616 = vsel %vm352, %v610, 0
        %v619 = vsel %vm352, %v611, 0
        %621 = vmatprep.subr.bf16.mxu0 %v619
        %622 = vmatpush1.bf16.msra.mxu0 %v616
        %623 = vmatprep.subr.bf16.mxu0 0
        %624 = vmatpush1.bf16.msra.mxu0 0
        %625 = vmatprep.subr.bf16.mxu0 0
        %626 = vmatpush1.bf16.msra.mxu0 0
        %627 = vmatprep.subr.bf16.mxu0 0
        %628 = vmatpush1.bf16.msra.mxu0 0
        %629 = vmatprep.subr.bf16.mxu0 0
        %630 = vmatpush1.bf16.msra.mxu0 0
        %631 = vmatprep.subr.bf16.mxu0 0
        %632 = vmatpush1.bf16.msra.mxu0 0
        %633 = vmatprep.subr.bf16.mxu0 0
        %634 = vmatpush1.bf16.msra.mxu0 0
        %635 = vmatprep.subr.bf16.mxu0 0
        %636 = vmatpush1.bf16.msra.mxu0 0
        %637 = vmatprep.subr.bf16.mxu0 0
        %638 = vmatpush1.bf16.msra.mxu0 0
        %639 = vmatprep.subr.bf16.mxu0 0
        %640 = vmatpush1.bf16.msra.mxu0 0
        %641 = vmatprep.subr.bf16.mxu0 0
        %642 = vmatpush1.bf16.msra.mxu0 0
        %643 = vmatprep.subr.bf16.mxu0 0
        %644 = vmatpush1.bf16.msra.mxu0 0
        %645 = vmatprep.subr.bf16.mxu0 0
        %646 = vmatpush1.bf16.msra.mxu0 0
        %647 = vmatprep.subr.bf16.mxu0 0
        %648 = vmatpush1.bf16.msra.mxu0 0
        %649 = vmatprep.subr.bf16.mxu0 0
        %650 = vmatpush1.bf16.msra.mxu0 0
        %651 = vmatprep.subr.bf16.mxu0 0
        %652 = vmatpush1.bf16.msra.mxu0 0
        %653 = vmatprep.mubr.bf16.mxu0 0
        %654 = vmatmul.mubr.bf16.gmra.mrb[0].mxu0 %v613
        %v655 = vpop.f32.mrb[0].mxu0
        %v656 = vadd.f32 %v597, %v655
        %v657 = vpop.f32.mrb[0].mxu0
        %v658 = vadd.f32 %v599, %v657
        %v659 = vpop.f32.mrb[0].mxu0
        %v660 = vpop.f32.mrb[0].mxu0
        %661 = vdwg.mxu0
        %s662 = scalar_lea.vmem %s3, 28
        %v663 = vld [vmem:[%s662] sm:$0xf]
        %664 = vrot.lane.b32.xlu0 %v332, 32
        %v665 = vpop.permute.xlu0 %664
        %666 = vrot.lane.b32.xlu0 %v333, 32
        %v667 = vpop.permute.xlu0 %666
        %668 = vrot.lane.b32.xlu0 %v324, 32
        %v669 = vpop.permute.xlu0 %668
        %vm670 = vcmask 261120
        %v671 = vsel %vm670, %v665, %v667
        %v672 = vsel %vm670, %v667, %v669
        %v674 = vsel %vm348, %v663, 0
        %v677 = vsel %vm352, %v671, 0
        %v680 = vsel %vm352, %v672, 0
        %682 = vmatprep.subr.bf16.mxu0 %v680
        %683 = vmatpush1.bf16.msra.mxu0 %v677
        %684 = vmatprep.subr.bf16.mxu0 0
        %685 = vmatpush1.bf16.msra.mxu0 0
        %686 = vmatprep.subr.bf16.mxu0 0
        %687 = vmatpush1.bf16.msra.mxu0 0
        %688 = vmatprep.subr.bf16.mxu0 0
        %689 = vmatpush1.bf16.msra.mxu0 0
        %690 = vmatprep.subr.bf16.mxu0 0
        %691 = vmatpush1.bf16.msra.mxu0 0
        %692 = vmatprep.subr.bf16.mxu0 0
        %693 = vmatpush1.bf16.msra.mxu0 0
        %694 = vmatprep.subr.bf16.mxu0 0
        %695 = vmatpush1.bf16.msra.mxu0 0
        %696 = vmatprep.subr.bf16.mxu0 0
        %697 = vmatpush1.bf16.msra.mxu0 0
        %698 = vmatprep.subr.bf16.mxu0 0
        %699 = vmatpush1.bf16.msra.mxu0 0
        %700 = vmatprep.subr.bf16.mxu0 0
        %701 = vmatpush1.bf16.msra.mxu0 0
        %702 = vmatprep.subr.bf16.mxu0 0
        %703 = vmatpush1.bf16.msra.mxu0 0
        %704 = vmatprep.subr.bf16.mxu0 0
        %705 = vmatpush1.bf16.msra.mxu0 0
        %706 = vmatprep.subr.bf16.mxu0 0
        %707 = vmatpush1.bf16.msra.mxu0 0
        %708 = vmatprep.subr.bf16.mxu0 0
        %709 = vmatpush1.bf16.msra.mxu0 0
        %710 = vmatprep.subr.bf16.mxu0 0
        %711 = vmatpush1.bf16.msra.mxu0 0
        %712 = vmatprep.subr.bf16.mxu0 0
        %713 = vmatpush1.bf16.msra.mxu0 0
        %714 = vmatprep.mubr.bf16.mxu0 0
        %715 = vmatmul.mubr.bf16.gmra.mrb[0].mxu0 %v674
        %v716 = vpop.f32.mrb[0].mxu0
        %v717 = vadd.f32 0.0, %v716
        %v718 = vpop.f32.mrb[0].mxu0
        %v719 = vadd.f32 0.0, %v718
        %v720 = vpop.f32.mrb[0].mxu0
        %v721 = vpop.f32.mrb[0].mxu0
        %722 = vdwg.mxu0
        %v723 = vadd.f32 %v656, %v717
        %v724 = vadd.f32 %v658, %v719
        %v725 = vadd.f32 %v538, %v723
        %v726 = vadd.f32 %v539, %v724
        %s727 = scalar_lea.vmem %s3, 8
        %v728 = vld [vmem:[%s727] sm:$0xf]
        %s729 = scalar_lea.vmem %s3, 20
        %v730 = vld [vmem:[%s729] sm:$0xf]
        %731 = vrot.lane.b32.xlu0 %v332, 63
        %v732 = vpop.permute.xlu0 %731
        %733 = vrot.lane.b32.xlu0 %v333, 63
        %v734 = vpop.permute.xlu0 %733
        %735 = vrot.lane.b32.xlu0 %v324, 63
        %v736 = vpop.permute.xlu0 %735
        %vm737 = vcmask 515072
        %v738 = vsel %vm737, %v732, %v734
        %v739 = vsel %vm737, %v734, %v736
        %v741 = vsel %vm348, %v730, 0
        %v744 = vsel %vm352, %v738, 0
        %v747 = vsel %vm352, %v739, 0
        %749 = vmatprep.subr.bf16.mxu0 %v747
        %750 = vmatpush1.bf16.msra.mxu0 %v744
        %751 = vmatprep.subr.bf16.mxu0 0
        %752 = vmatpush1.bf16.msra.mxu0 0
        %753 = vmatprep.subr.bf16.mxu0 0
        %754 = vmatpush1.bf16.msra.mxu0 0
        %755 = vmatprep.subr.bf16.mxu0 0
        %756 = vmatpush1.bf16.msra.mxu0 0
        %757 = vmatprep.subr.bf16.mxu0 0
        %758 = vmatpush1.bf16.msra.mxu0 0
        %759 = vmatprep.subr.bf16.mxu0 0
        %760 = vmatpush1.bf16.msra.mxu0 0
        %761 = vmatprep.subr.bf16.mxu0 0
        %762 = vmatpush1.bf16.msra.mxu0 0
        %763 = vmatprep.subr.bf16.mxu0 0
        %764 = vmatpush1.bf16.msra.mxu0 0
        %765 = vmatprep.subr.bf16.mxu0 0
        %766 = vmatpush1.bf16.msra.mxu0 0
        %767 = vmatprep.subr.bf16.mxu0 0
        %768 = vmatpush1.bf16.msra.mxu0 0
        %769 = vmatprep.subr.bf16.mxu0 0
        %770 = vmatpush1.bf16.msra.mxu0 0
        %771 = vmatprep.subr.bf16.mxu0 0
        %772 = vmatpush1.bf16.msra.mxu0 0
        %773 = vmatprep.subr.bf16.mxu0 0
        %774 = vmatpush1.bf16.msra.mxu0 0
        %775 = vmatprep.subr.bf16.mxu0 0
        %776 = vmatpush1.bf16.msra.mxu0 0
        %777 = vmatprep.subr.bf16.mxu0 0
        %778 = vmatpush1.bf16.msra.mxu0 0
        %779 = vmatprep.subr.bf16.mxu0 0
        %780 = vmatpush1.bf16.msra.mxu0 0
        %781 = vmatprep.mubr.bf16.mxu0 0
        %782 = vmatmul.mubr.bf16.gmra.mrb[0].mxu0 %v741
        %v783 = vpop.f32.mrb[0].mxu0
        %v784 = vadd.f32 0.0, %v783
        %v785 = vpop.f32.mrb[0].mxu0
        %v786 = vadd.f32 0.0, %v785
        %v787 = vpop.f32.mrb[0].mxu0
        %v788 = vpop.f32.mrb[0].mxu0
        %789 = vdwg.mxu0
        %790 = vrot.lane.b32.xlu0 %v332, 95
        %v791 = vpop.permute.xlu0 %790
        %792 = vrot.lane.b32.xlu0 %v333, 95
        %v793 = vpop.permute.xlu0 %792
        %794 = vrot.lane.b32.xlu0 %v324, 95
        %v795 = vpop.permute.xlu0 %794
        %vm796 = vcmask 777216
        %v797 = vsel %vm796, %v791, %v793
        %v798 = vsel %vm796, %v793, %v795
        %v800 = vsel %vm348, %v728, 0
        %v803 = vsel %vm352, %v797, 0
        %v806 = vsel %vm352, %v798, 0
        %808 = vmatprep.subr.bf16.mxu0 %v806
        %809 = vmatpush1.bf16.msra.mxu0 %v803
        %810 = vmatprep.subr.bf16.mxu0 0
        %811 = vmatpush1.bf16.msra.mxu0 0
        %812 = vmatprep.subr.bf16.mxu0 0
        %813 = vmatpush1.bf16.msra.mxu0 0
        %814 = vmatprep.subr.bf16.mxu0 0
        %815 = vmatpush1.bf16.msra.mxu0 0
        %816 = vmatprep.subr.bf16.mxu0 0
        %817 = vmatpush1.bf16.msra.mxu0 0
        %818 = vmatprep.subr.bf16.mxu0 0
        %819 = vmatpush1.bf16.msra.mxu0 0
        %820 = vmatprep.subr.bf16.mxu0 0
        %821 = vmatpush1.bf16.msra.mxu0 0
        %822 = vmatprep.subr.bf16.mxu0 0
        %823 = vmatpush1.bf16.msra.mxu0 0
        %824 = vmatprep.subr.bf16.mxu0 0
        %825 = vmatpush1.bf16.msra.mxu0 0
        %826 = vmatprep.subr.bf16.mxu0 0
        %827 = vmatpush1.bf16.msra.mxu0 0
        %828 = vmatprep.subr.bf16.mxu0 0
        %829 = vmatpush1.bf16.msra.mxu0 0
        %830 = vmatprep.subr.bf16.mxu0 0
        %831 = vmatpush1.bf16.msra.mxu0 0
        %832 = vmatprep.subr.bf16.mxu0 0
        %833 = vmatpush1.bf16.msra.mxu0 0
        %834 = vmatprep.subr.bf16.mxu0 0
        %835 = vmatpush1.bf16.msra.mxu0 0
        %836 = vmatprep.subr.bf16.mxu0 0
        %837 = vmatpush1.bf16.msra.mxu0 0
        %838 = vmatprep.subr.bf16.mxu0 0
        %839 = vmatpush1.bf16.msra.mxu0 0
        %840 = vmatprep.mubr.bf16.mxu0 0
        %841 = vmatmul.mubr.bf16.gmra.mrb[0].mxu0 %v800
        %v842 = vpop.f32.mrb[0].mxu0
        %v843 = vadd.f32 %v784, %v842
        %v844 = vpop.f32.mrb[0].mxu0
        %v845 = vadd.f32 %v786, %v844
        %v846 = vpop.f32.mrb[0].mxu0
        %v847 = vpop.f32.mrb[0].mxu0
        %848 = vdwg.mxu0
        %s849 = scalar_lea.vmem %s3, 32
        %v850 = vld [vmem:[%s849] sm:$0xf]
        %851 = vrot.lane.b32.xlu0 %v332, 31
        %v852 = vpop.permute.xlu0 %851
        %853 = vrot.lane.b32.xlu0 %v333, 31
        %v854 = vpop.permute.xlu0 %853
        %855 = vrot.lane.b32.xlu0 %v324, 31
        %v856 = vpop.permute.xlu0 %855
        %vm857 = vcmask 252928
        %v858 = vsel %vm857, %v852, %v854
        %v859 = vsel %vm857, %v854, %v856
        %v861 = vsel %vm348, %v850, 0
        %v864 = vsel %vm352, %v858, 0
        %v867 = vsel %vm352, %v859, 0
        %869 = vmatprep.subr.bf16.mxu0 %v867
        %870 = vmatpush1.bf16.msra.mxu0 %v864
        %871 = vmatprep.subr.bf16.mxu0 0
        %872 = vmatpush1.bf16.msra.mxu0 0
        %873 = vmatprep.subr.bf16.mxu0 0
        %874 = vmatpush1.bf16.msra.mxu0 0
        %875 = vmatprep.subr.bf16.mxu0 0
        %876 = vmatpush1.bf16.msra.mxu0 0
        %877 = vmatprep.subr.bf16.mxu0 0
        %878 = vmatpush1.bf16.msra.mxu0 0
        %879 = vmatprep.subr.bf16.mxu0 0
        %880 = vmatpush1.bf16.msra.mxu0 0
        %881 = vmatprep.subr.bf16.mxu0 0
        %882 = vmatpush1.bf16.msra.mxu0 0
        %883 = vmatprep.subr.bf16.mxu0 0
        %884 = vmatpush1.bf16.msra.mxu0 0
        %885 = vmatprep.subr.bf16.mxu0 0
        %886 = vmatpush1.bf16.msra.mxu0 0
        %887 = vmatprep.subr.bf16.mxu0 0
        %888 = vmatpush1.bf16.msra.mxu0 0
        %889 = vmatprep.subr.bf16.mxu0 0
        %890 = vmatpush1.bf16.msra.mxu0 0
        %891 = vmatprep.subr.bf16.mxu0 0
        %892 = vmatpush1.bf16.msra.mxu0 0
        %893 = vmatprep.subr.bf16.mxu0 0
        %894 = vmatpush1.bf16.msra.mxu0 0
        %895 = vmatprep.subr.bf16.mxu0 0
        %896 = vmatpush1.bf16.msra.mxu0 0
        %897 = vmatprep.subr.bf16.mxu0 0
        %898 = vmatpush1.bf16.msra.mxu0 0
        %899 = vmatprep.subr.bf16.mxu0 0
        %900 = vmatpush1.bf16.msra.mxu0 0
        %901 = vmatprep.mubr.bf16.mxu0 0
        %902 = vmatmul.mubr.bf16.gmra.mrb[0].mxu0 %v861
        %v903 = vpop.f32.mrb[0].mxu0
        %v904 = vadd.f32 0.0, %v903
        %v905 = vpop.f32.mrb[0].mxu0
        %v906 = vadd.f32 0.0, %v905
        %v907 = vpop.f32.mrb[0].mxu0
        %v908 = vpop.f32.mrb[0].mxu0
        %909 = vdwg.mxu0
        %v910 = vadd.f32 %v843, %v904
        %v911 = vadd.f32 %v845, %v906
        %vm912 = vcmp.lt.f32.partialorder %v334, 31.0
        %v913 = vsel %vm912, 1, 0
        %v914 = vcvt.s32.f32 %v913
        %v916 = vlaneseq
        %v917 = vshrl.u32 %v916, 7
        %v918 = vsub.s32 0, %v917
        %v919 = vrot.slane %v914, %v918
        %v920 = vlaneseq
        %v921 = vshrl.u32 %v920, 7
        %v922 = vsub.s32 1, %v921
        %v923 = vrot.slane %v914, %v922
        %v926 = vmul.f32 %v910, %v919
        %v927 = vmul.f32 %v911, %v923
        %v928 = vadd.f32 %v725, %v926
        %v929 = vadd.f32 %v726, %v927
        %vm930 = vcmp.ge.f32.partialorder %v334, 0.0
        %v931 = vsel %vm930, 1, 0
        %v932 = vcvt.s32.f32 %v931
        %v934 = vlaneseq
        %v935 = vshrl.u32 %v934, 7
        %v936 = vsub.s32 0, %v935
        %v937 = vrot.slane %v932, %v936
        %v938 = vlaneseq
        %v939 = vshrl.u32 %v938, 7
        %v940 = vsub.s32 1, %v939
        %v941 = vrot.slane %v932, %v940
        %v944 = vmul.f32 %v928, %v937
        %v945 = vmul.f32 %v929, %v941
        %v946 = vadd.f32 %v944, %v945
        %947 = vadd.xlane.f32.xlu0 %v946
        %v948 = vpop.xlane.xlu0 %947
        %v949 = vmul.f32 %v944, %v944
        %v950 = vmul.f32 %v945, %v945
        %v951 = vadd.f32 %v949, %v950
        %952 = vadd.xlane.f32.xlu0 %v951
        %v953 = vpop.xlane.xlu0 %952
        %vm954 = vcmask 7168
        %v955 = vsel %vm954, %v948, %v953
        %vm956 = vcmask 15360
        %957 = vst.msk [vmem:[%s321] sm:$0xff] %vm956, %v955
        %p958 = scmp.lt.s32.totalorder %s22, 1
        %s959 = scalar_select %p958, %s22, 1
        %p960 = scmp.lt.s32.totalorder %s23, 3
        %s961 = scalar_select %p960, %s23, 3
        %s962 = smul.addr %s959, 4
        %s963 = sadd.s32 %s961, %s962
        %s964 = smul.addr %s963, 8
        %s965 = scalar_lea.vmem %s4, %s964
        // Predicated region
        $region41: #{tpu_custom_call.1} parent=35 // pred_check
          %p966 = pneg %p157
        $region42: #{tpu_custom_call.1} parent=35 // pred_check_branch
          %968 = sbr.rel (%p966) target = $region44
        $region43: #{tpu_custom_call.1} parent=35 // pred_region
          _
        $region44: #{tpu_custom_call.1} parent=35 // pred_fallthru
          _
      $region36: #{tpu_custom_call.1} parent=5 // pred_fallthru
        _
      %p969 = scmp.le.s32.totalorder 2, %s13
      // Predicated region
      $region45: #{tpu_custom_call.1} parent=5 // pred_check
        %p970 = pneg %p969
      $region46: #{tpu_custom_call.1} parent=5 // pred_check_branch
        %972 = sbr.rel (%p970) target = $region48
      $region47: #{tpu_custom_call.1} parent=5 // pred_region
        %s973 = ssub.s32 %s13, 2
        // Predicated region
        $region49: #{tpu_custom_call.1} parent=47 // pred_check
          %p974 = pneg %p163
        $region50: #{tpu_custom_call.1} parent=47 // pred_check_branch
          %976 = sbr.rel (%p974) target = $region52
        $region51: #{tpu_custom_call.1} parent=47 // pred_region
          %p977 = scmp.lt.s32.totalorder %s24, 1
          %s978 = scalar_select %p977, %s24, 1
          %p979 = scmp.lt.s32.totalorder %s25, 3
          %s980 = scalar_select %p979, %s25, 3
          %s981 = smul.addr %s978, 4
          %s982 = sadd.s32 %s980, %s981
          %s983 = smul.addr %s982, 8
          %s984 = scalar_lea.vmem %s4, %s983
        $region52: #{tpu_custom_call.1} parent=47 // pred_fallthru
          _
      $region48: #{tpu_custom_call.1} parent=5 // pred_fallthru
        _
    $region6: #{tpu_custom_call.1} parent=1 // loop_footer
      %s17 = sadd.s32 1, %s13
    $region7: #{tpu_custom_call.1} parent=1 // loop_footer_branch
      %12 = sbr.rel target = $region3
    $region8: #{tpu_custom_call.1} parent=1 // loop_exit
      _
    %985 = vsyncpa [#allocation3], 1
    %s986 = scalar_lea.sflag [#allocation3], 1
    %987 = vsyncpa %s986, 1

</llo_original>
